<compile_context>
chip_gen: v7x
topology: tpu7x:2x2x1
jax: 0.10.0
libtpu: 0.0.40
codegen_flags: <defaults>
</compile_context>

<pallas_src>
import jax
import jax.numpy as jnp
from jax.experimental import pallas as pl
from jax.experimental.pallas import tpu as pltpu


def _mul_kernel(x_ref, y_ref, o_ref):
    # Pure VPU elementwise hot path: x * y * 10.0
    o_ref[...] = x_ref[...] * y_ref[...] * 10.0


def _round_up(a, b):
    return -(-a // b) * b


_MAX_ROW_TILE = 512  # 512 x 1024 f32 = 2 MiB per block buffer
_LANE_CANDIDATES = (1024, 512, 256, 128)


def ftest_forward(x, y, *, min_kernel_elems=1 << 15):
    """Computes x * y * 10.0. Uses a Pallas TPU kernel for non-tiny inputs."""
    assert x.shape == y.shape, "broadcasting not needed for this module's tests"
    orig_shape = x.shape
    n = int(x.size)

    # Match PyTorch-style type promotion if dtypes differ.
    out_dtype = jnp.result_type(x.dtype, y.dtype)
    if x.dtype != out_dtype:
        x = x.astype(out_dtype)
    if y.dtype != out_dtype:
        y = y.astype(out_dtype)

    # Tiny inputs: XLA's fused elementwise is strictly faster than a kernel launch.
    if n < min_kernel_elems:
        return x * y * 10.0

    # ---- Choose a lane-dense 2-D slab layout ------------------------------
    lane = None
    for cand in _LANE_CANDIDATES:
        if n % cand == 0:
            lane = cand
            break

    xf = jnp.ravel(x)
    yf = jnp.ravel(y)
    needs_slice = False
    if lane is None:
        # Rare odd element count: pad flat arrays up to a multiple of 128.
        lane = 128
        padded_n = _round_up(n, lane)
        xf = jnp.pad(xf, (0, padded_n - n))
        yf = jnp.pad(yf, (0, padded_n - n))
        needs_slice = True
    else:
        padded_n = n

    rows = padded_n // lane
    x2 = xf.reshape(rows, lane)
    y2 = yf.reshape(rows, lane)

    # ---- Row tiling --------------------------------------------------------
    if rows <= 8:
        # Full-extent block (always a legal block shape).
        row_tile = rows
    elif rows <= _MAX_ROW_TILE:
        # Try to split into >= 2 blocks (megacore) with a multiple-of-8 tile.
        half = _round_up(-(-rows // 2), 8)
        row_tile = half if half < rows else rows
    else:
        row_tile = _MAX_ROW_TILE

    grid = (pl.cdiv(rows, row_tile),)

    out = pl.pallas_call(
        _mul_kernel,
        out_shape=jax.ShapeDtypeStruct((rows, lane), out_dtype),
        grid_spec=pl.GridSpec(
            grid=grid,
            in_specs=[
                pl.BlockSpec((row_tile, lane), lambda i: (i, 0)),
                pl.BlockSpec((row_tile, lane), lambda i: (i, 0)),
            ],
            out_specs=pl.BlockSpec((row_tile, lane), lambda i: (i, 0)),
        ),
        compiler_params=pltpu.CompilerParams(
            dimension_semantics=("parallel",),
        ),
    )(x2, y2)

    out = out.reshape(-1)
    if needs_slice:
        out = out[:n]
    return out.reshape(orig_shape)


if __name__ == "__main__":
    key = jax.random.PRNGKey(0)
    keys = jax.random.split(key, 8)

    # 1) Module-sized input (NCHW 2x4x16x16): tiny-input plain-JAX fast path.
    x = jax.random.normal(keys[0], (2, 4, 16, 16), dtype=jnp.float32)
    y = jax.random.normal(keys[1], (2, 4, 16, 16), dtype=jnp.float32)
    ref_small = x * y * 10.0
    out_small = jax.block_until_ready(ftest_forward(x, y))
    assert out_small.shape == ref_small.shape and out_small.dtype == ref_small.dtype
    assert jnp.allclose(out_small, ref_small, atol=1e-6, rtol=1e-6)

    # 1b) Same tiny shape, but force the Pallas path (full-extent row block).
    out_small_k = jax.block_until_ready(ftest_forward(x, y, min_kernel_elems=0))
    assert jnp.allclose(out_small_k, ref_small, atol=1e-6, rtol=1e-6)

    # 2) Lane-aligned input with a partial trailing row-block
    #    (n = 128000 -> lane=1024, rows=125, row_tile=64, grid=(2,)).
    xb = jax.random.normal(keys[2], (2, 500, 128), dtype=jnp.float32)
    yb = jax.random.normal(keys[3], (2, 500, 128), dtype=jnp.float32)
    ref_big = xb * yb * 10.0
    out_big = jax.block_until_ready(ftest_forward(xb, yb))
    assert out_big.shape == ref_big.shape and out_big.dtype == ref_big.dtype
    assert jnp.allclose(out_big, ref_big, atol=1e-6, rtol=1e-6)

    # 3) Odd element count (n = 33300, not a multiple of 128) -> pad fallback.
    xo = jax.random.normal(keys[4], (3, 111, 100), dtype=jnp.float32)
    yo = jax.random.normal(keys[5], (3, 111, 100), dtype=jnp.float32)
    ref_odd = xo * yo * 10.0
    out_odd = jax.block_until_ready(ftest_forward(xo, yo))
    assert out_odd.shape == ref_odd.shape and out_odd.dtype == ref_odd.dtype
    assert jnp.allclose(out_odd, ref_odd, atol=1e-6, rtol=1e-6)

    print("KERNEL_OK")
</pallas_src>

<mosaic_0001>
module attributes {stable_mosaic.version = 11 : i64} {
  func.func @_mul_kernel(%arg0: i32, %arg1: memref<2x1024xf32, #tpu.memory_space<vmem>>, %arg2: memref<2x1024xf32, #tpu.memory_space<vmem>>, %arg3: memref<2x1024xf32, #tpu.memory_space<vmem>>) attributes {dimension_semantics = [#tpu.dimension_semantics<parallel>], iteration_bounds = array<i64: 1>, scalar_prefetch = 0 : i64, scratch_operands = 0 : i64, tpu.core_type = #tpu.core_type<tc>, window_params = [{transform_indices = @transform_0, window_bounds = array<i64: 2, 1024>}, {transform_indices = @transform_1, window_bounds = array<i64: 2, 1024>}, {transform_indices = @transform_2, window_bounds = array<i64: 2, 1024>}]} {
    %c0 = arith.constant 0 : index
    %c0_0 = arith.constant 0 : index
    %0 = vector.load %arg1[%c0, %c0_0] : memref<2x1024xf32, #tpu.memory_space<vmem>>, vector<2x1024xf32>
    %c0_1 = arith.constant 0 : index
    %c0_2 = arith.constant 0 : index
    %1 = vector.load %arg2[%c0_1, %c0_2] : memref<2x1024xf32, #tpu.memory_space<vmem>>, vector<2x1024xf32>
    %2 = arith.mulf %0, %1 : vector<2x1024xf32>
    %cst = arith.constant 1.000000e+01 : f32
    %3 = vector.broadcast %cst : f32 to vector<2x1024xf32>
    %4 = arith.mulf %2, %3 : vector<2x1024xf32>
    %c0_3 = arith.constant 0 : index
    %c0_4 = arith.constant 0 : index
    %5 = vector.load %arg3[%c0_3, %c0_4] : memref<2x1024xf32, #tpu.memory_space<vmem>>, vector<2x1024xf32>
    tpu.vector_store %arg3[%c0_3, %c0_4], %4 {strides = array<i32>} : memref<2x1024xf32, #tpu.memory_space<vmem>>, vector<2x1024xf32>,
    return
  }
  func.func @transform_0(%arg0: i32) -> (i32, i32) {
    %c0_i32 = arith.constant 0 : i32
    %c0_i32_0 = arith.constant 0 : i32
    return %arg0, %c0_i32 : i32, i32
  }
  func.func @transform_1(%arg0: i32) -> (i32, i32) {
    %c0_i32 = arith.constant 0 : i32
    %c0_i32_0 = arith.constant 0 : i32
    return %arg0, %c0_i32 : i32, i32
  }
  func.func @transform_2(%arg0: i32) -> (i32, i32) {
    %c0_i32 = arith.constant 0 : i32
    %c0_i32_0 = arith.constant 0 : i32
    return %arg0, %c0_i32 : i32, i32
  }
}

</mosaic_0001>

<llo_original>
// kernel: tpu_custom_call.1
$region0: #{tpu_custom_call.1}
  #allocation0 [shape = 'u32[]', space=smem, size = 0x4, offset = 0x4, fixed_abs, tag = 'smem constant byte address 0x4 - core index']
  #allocation1 [shape = 'u32[144,128]{1,0:T(1,128)}', space=vmem, size = 0x12000, scoped, tag = 'internal scratch']
  %s0 = inlined_call_operand.hbm [shape: f32[2,1024], index: 0, kind: input, shape index: {}]
  %s1 = inlined_call_operand.hbm [shape: f32[2,1024], index: 1, kind: input, shape index: {}]
  %s2 = inlined_call_operand.hbm [shape: f32[2,1024], index: 2, kind: output, shape index: {}]
  %s3 = sld [smem:[#allocation0]]
  $region26: #{tpu_custom_call.1} parent=0
    _
  %s5 = ssub.s32 1, %s3
  %s6 = scalar_select 0, %s5, %s3
  $region1: #{tpu_custom_call.1} parent=0
    #allocation2 [shape = 'u8[8192]{0}', space=vmem, size = 0x2000, scoped, tag = 'input window, operand 0, single buffered']
    #allocation3 [shape = 's32[1]{0}', space=sflag, size = 0x4, scoped, tag = 'scoped memory for tpu_custom_call.1']
    #allocation4 [shape = 's32[1]{0}', space=sflag, size = 0x4, scoped, tag = 'scoped memory for tpu_custom_call.1']
    #allocation5 [shape = 'u8[8192]{0}', space=vmem, size = 0x2000, scoped, tag = 'input window, operand 1, single buffered']
    #allocation6 [shape = 's32[1]{0}', space=sflag, size = 0x4, scoped, tag = 'scoped memory for tpu_custom_call.1']
    #allocation7 [shape = 'u8[8192]{0}', space=vmem, size = 0x2000, scoped, tag = 'output window, operand 0, single buffered']
    %7 = vsyncpa [#allocation3], 0
    %8 = vsyncpa [#allocation6], 0
    %9 = vsyncpa [#allocation4], 0
    // Predicated region
    $region2: #{tpu_custom_call.1} parent=1 // pred_check
      _
    $region3: #{tpu_custom_call.1} parent=1 // pred_check_branch
      %11 = sbr.rel (0) target = $region5
    $region4: #{tpu_custom_call.1} parent=1 // pred_region
      %s13 = ssub.s32 256, 256
      %14 = vsyncadd [#allocation3], %s13
      %s16 = sshll.u32 [#allocation2], 4
      %s17 = int_to_ptr.vmem [resolvable:$true] %s16
      %19 = dma.hbm_to_vmem [thread:$0]  %s0, 256, %s17, [#allocation3]
    $region5: #{tpu_custom_call.1} parent=1 // pred_fallthru
      _
    // Predicated region
    $region6: #{tpu_custom_call.1} parent=1 // pred_check
      _
    $region7: #{tpu_custom_call.1} parent=1 // pred_check_branch
      %21 = sbr.rel (0) target = $region9
    $region8: #{tpu_custom_call.1} parent=1 // pred_region
      %s23 = ssub.s32 256, 256
      %24 = vsyncadd [#allocation6], %s23
      %s26 = sshll.u32 [#allocation5], 4
      %s27 = int_to_ptr.vmem [resolvable:$true] %s26
      %29 = dma.hbm_to_vmem [thread:$0]  %s1, 256, %s27, [#allocation6]
    $region9: #{tpu_custom_call.1} parent=1 // pred_fallthru
      _
    // Predicated region
    $region10: #{tpu_custom_call.1} parent=1 // pred_check
      _
    $region11: #{tpu_custom_call.1} parent=1 // pred_check_branch
      %31 = sbr.rel (0) target = $region13
    $region12: #{tpu_custom_call.1} parent=1 // pred_region
      %32 = dma.done [#allocation3], 256
    $region13: #{tpu_custom_call.1} parent=1 // pred_fallthru
      _
    // Predicated region
    $region14: #{tpu_custom_call.1} parent=1 // pred_check
      _
    $region15: #{tpu_custom_call.1} parent=1 // pred_check_branch
      %34 = sbr.rel (0) target = $region17
    $region16: #{tpu_custom_call.1} parent=1 // pred_region
      %35 = dma.done [#allocation6], 256
    $region17: #{tpu_custom_call.1} parent=1 // pred_fallthru
      _
    %v36 = vld [vmem:[#allocation2] sm:$0xff]
    %v37 = vld [vmem:[#allocation2 + $0x8] sm:$0xff]
    %v38 = vld [vmem:[#allocation5] sm:$0xff]
    %v39 = vld [vmem:[#allocation5 + $0x8] sm:$0xff]
    %v40 = vmul.f32 %v36, %v38
    %v41 = vmul.f32 %v37, %v39
    %v42 = vmul.f32 %v40, 10.0
    %v43 = vmul.f32 %v41, 10.0
    %44 = vst [vmem:[#allocation7] sm:$0xff] %v42
    %45 = vst [vmem:[#allocation7 + $0x8] sm:$0xff] %v43
    // Predicated region
    $region18: #{tpu_custom_call.1} parent=1 // pred_check
      _
    $region19: #{tpu_custom_call.1} parent=1 // pred_check_branch
      %47 = sbr.rel (0) target = $region21
    $region20: #{tpu_custom_call.1} parent=1 // pred_region
      %s49 = ssub.s32 256, 256
      %50 = vsyncadd [#allocation4], %s49
      %s52 = sshll.u32 [#allocation7], 4
      %s53 = int_to_ptr.vmem [resolvable:$true] %s52
      %55 = dma.vmem_to_hbm [thread:$0]  %s53, 256, %s2, [#allocation4]
    $region21: #{tpu_custom_call.1} parent=1 // pred_fallthru
      _
    // Predicated region
    $region22: #{tpu_custom_call.1} parent=1 // pred_check
      _
    $region23: #{tpu_custom_call.1} parent=1 // pred_check_branch
      %57 = sbr.rel (0) target = $region25
    $region24: #{tpu_custom_call.1} parent=1 // pred_region
      %58 = dma.done [#allocation4], 256
    $region25: #{tpu_custom_call.1} parent=1 // pred_fallthru
      _
    %59 = vsyncpa [#allocation3], 1
    %60 = vsyncpa [#allocation6], 1
    %61 = vsyncpa [#allocation4], 1

</llo_original>
